<compile_context>
chip_gen: v5e
topology: v5e:2x2
jax: 0.10.0
libtpu: 0.0.40
codegen_flags: <defaults>
</compile_context>

<pallas_src>
import functools

import jax
import jax.numpy as jnp
from jax import lax
from jax.experimental import pallas as pl
from jax.experimental.pallas import tpu as pltpu


# ------------------------------- helpers -------------------------------------

def _round_up(x, m):
    return ((x + m - 1) // m) * m


def _pick_row_tile(batch, requested, min_steps=2):
    """Clamp row_tile to the batch and keep >= min_steps grid steps if possible."""
    b8 = _round_up(max(batch, 1), 8)
    rt = max(8, min(_round_up(requested, 8), b8))
    if b8 >= min_steps * 8 and b8 // rt < min_steps:
        rt = _round_up((b8 + min_steps - 1) // min_steps, 8)
    return rt


# ----------------------------- Pallas kernel ---------------------------------

def _seqconv_kernel(x_ref, wc_ref, bc_ref, w1_ref, b1_ref, wh_ref, bh_ref,
                    wf_ref, bf_ref, o_ref, *, n_layers):
    # x_ref: (TB, C_in*L) rows of the flattened input batch (f32 in HBM).
    # Conv1d as one bf16 MXU matmul against the unrolled Toeplitz weight;
    # columns are already in torch.flatten(x, 1) order (c*L_out + t).
    h = jnp.dot(x_ref[...].astype(jnp.bfloat16), wc_ref[...],
                preferred_element_type=jnp.float32)
    h = jnp.maximum(h + bc_ref[...], 0.0)                 # f32 VPU epilogue
    # fc1
    h = jnp.dot(h.astype(jnp.bfloat16), w1_ref[...],
                preferred_element_type=jnp.float32)
    h = jnp.maximum(h + b1_ref[...], 0.0)
    # hidden Linear layers
    if n_layers <= 4:
        for i in range(n_layers):                         # static unroll, cheap
            h = jnp.dot(h.astype(jnp.bfloat16), wh_ref[i],
                        preferred_element_type=jnp.float32)
            h = jnp.maximum(h + bh_ref[i], 0.0)
    else:
        def body(i, h_carry):
            hh = jnp.dot(h_carry.astype(jnp.bfloat16), wh_ref[i],
                         preferred_element_type=jnp.float32)
            return jnp.maximum(hh + bh_ref[i], 0.0)
        h = lax.fori_loop(0, n_layers, body, h)
    # fc_final (no activation); narrow o_pad-lane f32 store (block == full dim).
    o_ref[...] = jnp.dot(h.astype(jnp.bfloat16), wf_ref[...],
                         preferred_element_type=jnp.float32) + bf_ref[...]


# ------------------- one-time weight relayout / padding ----------------------

def _unrolled_conv_weight(cw, L):
    """Dense Toeplitz weight W[cin*L + l, c*L_out + t] = cw[c, cin, l - t]."""
    C_feat, C_in, K = cw.shape
    L_out = L - K + 1
    Wu = jnp.zeros((C_in, L, C_feat, L_out), jnp.float32)
    for j in range(K):
        shift = jnp.eye(L, L_out, k=-j, dtype=jnp.float32)   # 1 iff l == t + j
        Wu = Wu + shift[None, :, None, :] * jnp.transpose(cw[:, :, j])[:, None, :, None]
    return Wu.reshape(C_in * L, C_feat * L_out)


def prepare_params(params, *, column_height, n_layers):
    """Precompute (once) all matmul-form, lane-padded bf16 weights / f32 biases."""
    cw, cb, w1, b1, wfcs, bfcs, wf, bf = params
    C_feat, C_in, K = cw.shape
    L = column_height
    L_out = L - K + 1
    F = C_feat * L_out                  # torch.flatten(conv) width
    H = w1.shape[0]
    O = wf.shape[0]

    # Pads derived from the real dims (not hard-coded 128).
    f_pad = _round_up(F, 128)
    h_pad = _round_up(H, 128)
    o_pad = _round_up(O, 8) if O <= 64 else _round_up(O, 128)

    wc = _unrolled_conv_weight(cw, L)                                 # (C_in*L, F)
    wc_p = jnp.zeros((C_in * L, f_pad), jnp.float32).at[:, :F].set(wc)
    bc_flat = jnp.repeat(cb, L_out)                                   # flatten-order bias
    bc_p = jnp.zeros((1, f_pad), jnp.float32).at[0, :F].set(bc_flat)

    w1_p = jnp.zeros((f_pad, h_pad), jnp.float32).at[:F, :H].set(w1.T)
    b1_p = jnp.zeros((1, h_pad), jnp.float32).at[0, :H].set(b1)

    wh_p = jnp.zeros((n_layers, h_pad, h_pad), jnp.float32).at[:, :H, :H].set(
        jnp.transpose(wfcs, (0, 2, 1)))
    bh_p = jnp.zeros((n_layers, 1, h_pad), jnp.float32).at[:, 0, :H].set(bfcs)

    wf_p = jnp.zeros((h_pad, o_pad), jnp.float32).at[:H, :O].set(wf.T)
    bf_p = jnp.zeros((1, o_pad), jnp.float32).at[0, :O].set(bf)

    bf16 = jnp.bfloat16
    return dict(wc=wc_p.astype(bf16), bc=bc_p,
                w1=w1_p.astype(bf16), b1=b1_p,
                wh=wh_p.astype(bf16), bh=bh_p,
                wf=wf_p.astype(bf16), bf=bf_p,
                dims=(C_in, L, F, H, O))


# ------------------------------ forward pass ---------------------------------

def seqconv_forward(x, prepared, *, n_layers, row_tile=256):
    """x: (B, C_in, L) float32, PyTorch NCL layout."""
    C_in, L, F, H, O = prepared["dims"]
    B = x.shape[0]
    IN = C_in * L
    f_pad = prepared["wc"].shape[1]
    h_pad = prepared["w1"].shape[1]
    o_pad = prepared["wf"].shape[1]

    rt = _pick_row_tile(B, row_tile)
    B_pad = _round_up(B, rt)

    # Flatten input (row-major over (C_in, L) matches the Toeplitz row order);
    # pad batch rows up to the row tile.
    x_flat = x.reshape(B, IN)
    if B_pad != B:
        x_flat = jnp.pad(x_flat, ((0, B_pad - B), (0, 0)))

    def resident(shape):  # weights/biases: same block for every grid step
        return pl.BlockSpec(shape, lambda i, _s=shape: (0,) * len(_s))

    # Advisory cost estimate (padded MACs, f32 activations, bf16 weights).
    mac = IN * f_pad + f_pad * h_pad + n_layers * h_pad * h_pad + h_pad * o_pad
    weight_bytes = 2 * mac + 4 * (f_pad + 2 * h_pad * 1 + n_layers * h_pad + o_pad)
    cost = pl.CostEstimate(
        flops=2 * B_pad * mac,
        transcendentals=0,
        bytes_accessed=4 * B_pad * (IN + o_pad) + weight_bytes)

    out = pl.pallas_call(
        functools.partial(_seqconv_kernel, n_layers=n_layers),
        out_shape=jax.ShapeDtypeStruct((B_pad, o_pad), jnp.float32),
        grid=(B_pad // rt,),
        in_specs=[
            pl.BlockSpec((rt, IN), lambda i: (i, 0)),      # x rows
            resident((IN, f_pad)),                         # conv (Toeplitz) weight
            resident((1, f_pad)),                          # conv bias
            resident((f_pad, h_pad)),                      # fc1 weight
            resident((1, h_pad)),                          # fc1 bias
            resident((n_layers, h_pad, h_pad)),            # hidden weights
            resident((n_layers, 1, h_pad)),                # hidden biases
            resident((h_pad, o_pad)),                      # fc_final weight
            resident((1, o_pad)),                          # fc_final bias
        ],
        out_specs=pl.BlockSpec((rt, o_pad), lambda i: (i, 0)),
        compiler_params=pltpu.CompilerParams(
            dimension_semantics=("parallel",)),
        cost_estimate=cost,
    )(x_flat, prepared["wc"], prepared["bc"], prepared["w1"], prepared["b1"],
      prepared["wh"], prepared["bh"], prepared["wf"], prepared["bf"])

    return out[:B, :O]


# --------------------------- pure-JAX reference ------------------------------

def seqconv_ref(x, params, *, kernel_size, n_layers):
    cw, cb, w1, b1, wfcs, bfcs, wf, bf = params
    B, C_in, L = x.shape
    K = kernel_size
    L_out = L - K + 1
    conv = sum(jnp.einsum('bcl,oc->bol', x[:, :, j:j + L_out], cw[:, :, j])
               for j in range(K)) + cb[None, :, None]
    h = jax.nn.relu(conv).reshape(B, -1)          # torch.flatten(x, 1)
    h = jax.nn.relu(h @ w1.T + b1)
    for i in range(n_layers):
        h = jax.nn.relu(h @ wfcs[i].T + bfcs[i])
    return h @ wf.T + bf


# ----------------------------------- main -------------------------------------

if __name__ == "__main__":
    # Module hyperparameters (small, consistent with SeqConv.__init__)
    n_channels = 4          # conv input channels
    n_feature_channels = 8  # conv output channels
    column_height = 16      # sequence length L
    n_hidden = 32
    n_layers = 2
    output_dim = 4
    kernel_size = 3
    batch = 2

    key = jax.random.PRNGKey(0)
    ks = jax.random.split(key, 10)
    f32 = jnp.float32

    # Deterministic synthetic parameters (shapes match the torch module).
    cw = 0.1 * jax.random.normal(ks[0], (n_feature_channels, n_channels, kernel_size), f32)
    cb = 0.1 * jax.random.normal(ks[1], (n_feature_channels,), f32)
    fc1_in = n_feature_channels * (column_height - kernel_size + 1)
    w1 = 0.1 * jax.random.normal(ks[2], (n_hidden, fc1_in), f32)
    b1 = 0.1 * jax.random.normal(ks[3], (n_hidden,), f32)
    wfcs = 0.1 * jax.random.normal(ks[4], (n_layers, n_hidden, n_hidden), f32)
    bfcs = 0.1 * jax.random.normal(ks[5], (n_layers, n_hidden), f32)
    wf = 0.1 * jax.random.normal(ks[6], (output_dim, n_hidden), f32)
    bf = 0.1 * jax.random.normal(ks[7], (output_dim,), f32)
    params = (cw, cb, w1, b1, wfcs, bfcs, wf, bf)

    # One-time weight relayout / padding / bf16 cast (out of the forward path).
    prepared = jax.tree.map(jax.block_until_ready,
                            prepare_params(params, column_height=column_height,
                                           n_layers=n_layers))

    # Input in PyTorch NCL layout: (batch, n_channels, column_height)
    x = jax.random.normal(ks[8], (batch, n_channels, column_height), f32)

    out = seqconv_forward(x, prepared, n_layers=n_layers)
    out = jax.block_until_ready(out)

    ref = seqconv_ref(x, params, kernel_size=kernel_size, n_layers=n_layers)
    assert out.shape == (batch, output_dim)
    # bf16 matmul operands (f32 accumulation) -> tolerance loosened vs f32.
    assert jnp.allclose(out, ref, atol=2e-2, rtol=2e-2), (
        f"mismatch: max abs err {jnp.max(jnp.abs(out - ref))}")

    print("KERNEL_OK")
</pallas_src>

<mosaic_0001>
module attributes {stable_mosaic.version = 11 : i64} {
  func.func @_seqconv_kernel(%arg0: i32, %arg1: memref<8x64xf32, #tpu.memory_space<vmem>>, %arg2: memref<64x128xbf16, #tpu.memory_space<vmem>>, %arg3: memref<1x128xf32, #tpu.memory_space<vmem>>, %arg4: memref<128x128xbf16, #tpu.memory_space<vmem>>, %arg5: memref<1x128xf32, #tpu.memory_space<vmem>>, %arg6: memref<2x128x128xbf16, #tpu.memory_space<vmem>>, %arg7: memref<2x1x128xf32, #tpu.memory_space<vmem>>, %arg8: memref<128x8xbf16, #tpu.memory_space<vmem>>, %arg9: memref<1x8xf32, #tpu.memory_space<vmem>>, %arg10: memref<8x8xf32, #tpu.memory_space<vmem>>) attributes {dimension_semantics = [#tpu.dimension_semantics<parallel>], iteration_bounds = array<i64: 1>, scalar_prefetch = 0 : i64, scratch_operands = 0 : i64, tpu.core_type = #tpu.core_type<tc>, window_params = [{transform_indices = @transform_0, window_bounds = array<i64: 8, 64>}, {pipeline_mode = #tpu.pipeline_mode<synchronous>, transform_indices = @transform_1, window_bounds = array<i64: 64, 128>}, {pipeline_mode = #tpu.pipeline_mode<synchronous>, transform_indices = @transform_2, window_bounds = array<i64: 1, 128>}, {pipeline_mode = #tpu.pipeline_mode<synchronous>, transform_indices = @transform_3, window_bounds = array<i64: 128, 128>}, {pipeline_mode = #tpu.pipeline_mode<synchronous>, transform_indices = @transform_4, window_bounds = array<i64: 1, 128>}, {pipeline_mode = #tpu.pipeline_mode<synchronous>, transform_indices = @transform_5, window_bounds = array<i64: 2, 128, 128>}, {pipeline_mode = #tpu.pipeline_mode<synchronous>, transform_indices = @transform_6, window_bounds = array<i64: 2, 1, 128>}, {pipeline_mode = #tpu.pipeline_mode<synchronous>, transform_indices = @transform_7, window_bounds = array<i64: 128, 8>}, {pipeline_mode = #tpu.pipeline_mode<synchronous>, transform_indices = @transform_8, window_bounds = array<i64: 1, 8>}, {transform_indices = @transform_9, window_bounds = array<i64: 8, 8>}]} {
    %c0 = arith.constant 0 : index
    %c0_0 = arith.constant 0 : index
    %0 = vector.load %arg1[%c0, %c0_0] : memref<8x64xf32, #tpu.memory_space<vmem>>, vector<8x64xf32>
    %1 = arith.truncf %0 : vector<8x64xf32> to vector<8x64xbf16>
    %c0_1 = arith.constant 0 : index
    %c0_2 = arith.constant 0 : index
    %2 = vector.load %arg2[%c0_1, %c0_2] : memref<64x128xbf16, #tpu.memory_space<vmem>>, vector<64x128xbf16>
    %cst = arith.constant dense<0.000000e+00> : vector<8x128xf32>
    %3 = tpu.matmul %1, %2, %cst {dimension_numbers = #tpu.dot_dimension_numbers<[1], [0], [0], [1], [0, 0, 1, 1], [], []>} : vector<8x64xbf16>, vector<64x128xbf16>, vector<8x128xf32> -> vector<8x128xf32>
    %c0_3 = arith.constant 0 : index
    %c0_4 = arith.constant 0 : index
    %4 = vector.load %arg3[%c0_3, %c0_4] : memref<1x128xf32, #tpu.memory_space<vmem>>, vector<1x128xf32>
    %5 = vector.broadcast %4 : vector<1x128xf32> to vector<8x128xf32>
    %6 = arith.addf %3, %5 : vector<8x128xf32>
    %cst_5 = arith.constant 0.000000e+00 : f32
    %7 = vector.broadcast %cst_5 : f32 to vector<8x128xf32>
    %8 = arith.maximumf %6, %7 : vector<8x128xf32>
    %9 = arith.truncf %8 : vector<8x128xf32> to vector<8x128xbf16>
    %c0_6 = arith.constant 0 : index
    %c0_7 = arith.constant 0 : index
    %10 = vector.load %arg4[%c0_6, %c0_7] : memref<128x128xbf16, #tpu.memory_space<vmem>>, vector<128x128xbf16>
    %cst_8 = arith.constant dense<0.000000e+00> : vector<8x128xf32>
    %11 = tpu.matmul %9, %10, %cst_8 {dimension_numbers = #tpu.dot_dimension_numbers<[1], [0], [0], [1], [0, 0, 1, 1], [], []>} : vector<8x128xbf16>, vector<128x128xbf16>, vector<8x128xf32> -> vector<8x128xf32>
    %c0_9 = arith.constant 0 : index
    %c0_10 = arith.constant 0 : index
    %12 = vector.load %arg5[%c0_9, %c0_10] : memref<1x128xf32, #tpu.memory_space<vmem>>, vector<1x128xf32>
    %13 = vector.broadcast %12 : vector<1x128xf32> to vector<8x128xf32>
    %14 = arith.addf %11, %13 : vector<8x128xf32>
    %cst_11 = arith.constant 0.000000e+00 : f32
    %15 = vector.broadcast %cst_11 : f32 to vector<8x128xf32>
    %16 = arith.maximumf %14, %15 : vector<8x128xf32>
    %17 = arith.truncf %16 : vector<8x128xf32> to vector<8x128xbf16>
    %c0_12 = arith.constant 0 : index
    %c0_13 = arith.constant 0 : index
    %c0_14 = arith.constant 0 : index
    %18 = vector.load %arg6[%c0_12, %c0_13, %c0_14] : memref<2x128x128xbf16, #tpu.memory_space<vmem>>, vector<1x128x128xbf16>
    %19 = vector.shape_cast %18 : vector<1x128x128xbf16> to vector<128x128xbf16>
    %cst_15 = arith.constant dense<0.000000e+00> : vector<8x128xf32>
    %20 = tpu.matmul %17, %19, %cst_15 {dimension_numbers = #tpu.dot_dimension_numbers<[1], [0], [0], [1], [0, 0, 1, 1], [], []>} : vector<8x128xbf16>, vector<128x128xbf16>, vector<8x128xf32> -> vector<8x128xf32>
    %c0_16 = arith.constant 0 : index
    %c0_17 = arith.constant 0 : index
    %c0_18 = arith.constant 0 : index
    %21 = vector.load %arg7[%c0_16, %c0_17, %c0_18] : memref<2x1x128xf32, #tpu.memory_space<vmem>>, vector<1x1x128xf32>
    %22 = vector.shape_cast %21 : vector<1x1x128xf32> to vector<1x128xf32>
    %23 = vector.broadcast %22 : vector<1x128xf32> to vector<8x128xf32>
    %24 = arith.addf %20, %23 : vector<8x128xf32>
    %cst_19 = arith.constant 0.000000e+00 : f32
    %25 = vector.broadcast %cst_19 : f32 to vector<8x128xf32>
    %26 = arith.maximumf %24, %25 : vector<8x128xf32>
    %27 = arith.truncf %26 : vector<8x128xf32> to vector<8x128xbf16>
    %c1 = arith.constant 1 : index
    %c0_20 = arith.constant 0 : index
    %c0_21 = arith.constant 0 : index
    %28 = vector.load %arg6[%c1, %c0_20, %c0_21] : memref<2x128x128xbf16, #tpu.memory_space<vmem>>, vector<1x128x128xbf16>
    %29 = vector.shape_cast %28 : vector<1x128x128xbf16> to vector<128x128xbf16>
    %cst_22 = arith.constant dense<0.000000e+00> : vector<8x128xf32>
    %30 = tpu.matmul %27, %29, %cst_22 {dimension_numbers = #tpu.dot_dimension_numbers<[1], [0], [0], [1], [0, 0, 1, 1], [], []>} : vector<8x128xbf16>, vector<128x128xbf16>, vector<8x128xf32> -> vector<8x128xf32>
    %c1_23 = arith.constant 1 : index
    %c0_24 = arith.constant 0 : index
    %c0_25 = arith.constant 0 : index
    %31 = vector.load %arg7[%c1_23, %c0_24, %c0_25] : memref<2x1x128xf32, #tpu.memory_space<vmem>>, vector<1x1x128xf32>
    %32 = vector.shape_cast %31 : vector<1x1x128xf32> to vector<1x128xf32>
    %33 = vector.broadcast %32 : vector<1x128xf32> to vector<8x128xf32>
    %34 = arith.addf %30, %33 : vector<8x128xf32>
    %cst_26 = arith.constant 0.000000e+00 : f32
    %35 = vector.broadcast %cst_26 : f32 to vector<8x128xf32>
    %36 = arith.maximumf %34, %35 : vector<8x128xf32>
    %37 = arith.truncf %36 : vector<8x128xf32> to vector<8x128xbf16>
    %c0_27 = arith.constant 0 : index
    %c0_28 = arith.constant 0 : index
    %38 = vector.load %arg8[%c0_27, %c0_28] : memref<128x8xbf16, #tpu.memory_space<vmem>>, vector<128x8xbf16>
    %cst_29 = arith.constant dense<0.000000e+00> : vector<8x8xf32>
    %39 = tpu.matmul %37, %38, %cst_29 {dimension_numbers = #tpu.dot_dimension_numbers<[1], [0], [0], [1], [0, 0, 1, 1], [], []>} : vector<8x128xbf16>, vector<128x8xbf16>, vector<8x8xf32> -> vector<8x8xf32>
    %c0_30 = arith.constant 0 : index
    %c0_31 = arith.constant 0 : index
    %40 = vector.load %arg9[%c0_30, %c0_31] : memref<1x8xf32, #tpu.memory_space<vmem>>, vector<1x8xf32>
    %41 = vector.broadcast %40 : vector<1x8xf32> to vector<8x8xf32>
    %42 = arith.addf %39, %41 : vector<8x8xf32>
    %c0_32 = arith.constant 0 : index
    %c0_33 = arith.constant 0 : index
    %43 = vector.load %arg10[%c0_32, %c0_33] : memref<8x8xf32, #tpu.memory_space<vmem>>, vector<8x8xf32>
    tpu.vector_store %arg10[%c0_32, %c0_33], %42 {strides = array<i32>} : memref<8x8xf32, #tpu.memory_space<vmem>>, vector<8x8xf32>,
    return
  }
  func.func @transform_0(%arg0: i32) -> (i32, i32) {
    %c0_i32 = arith.constant 0 : i32
    %c0_i32_0 = arith.constant 0 : i32
    return %arg0, %c0_i32 : i32, i32
  }
  func.func @transform_1(%arg0: i32) -> (i32, i32) {
    %c0_i32 = arith.constant 0 : i32
    %c0_i32_0 = arith.constant 0 : i32
    %c0_i32_1 = arith.constant 0 : i32
    return %c0_i32, %c0_i32_0 : i32, i32
  }
  func.func @transform_2(%arg0: i32) -> (i32, i32) {
    %c0_i32 = arith.constant 0 : i32
    %c0_i32_0 = arith.constant 0 : i32
    %c0_i32_1 = arith.constant 0 : i32
    return %c0_i32, %c0_i32_0 : i32, i32
  }
  func.func @transform_3(%arg0: i32) -> (i32, i32) {
    %c0_i32 = arith.constant 0 : i32
    %c0_i32_0 = arith.constant 0 : i32
    %c0_i32_1 = arith.constant 0 : i32
    return %c0_i32, %c0_i32_0 : i32, i32
  }
  func.func @transform_4(%arg0: i32) -> (i32, i32) {
    %c0_i32 = arith.constant 0 : i32
    %c0_i32_0 = arith.constant 0 : i32
    %c0_i32_1 = arith.constant 0 : i32
    return %c0_i32, %c0_i32_0 : i32, i32
  }
  func.func @transform_5(%arg0: i32) -> (i32, i32, i32) {
    %c0_i32 = arith.constant 0 : i32
    %c0_i32_0 = arith.constant 0 : i32
    %c0_i32_1 = arith.constant 0 : i32
    %c0_i32_2 = arith.constant 0 : i32
    return %c0_i32, %c0_i32_0, %c0_i32_1 : i32, i32, i32
  }
  func.func @transform_6(%arg0: i32) -> (i32, i32, i32) {
    %c0_i32 = arith.constant 0 : i32
    %c0_i32_0 = arith.constant 0 : i32
    %c0_i32_1 = arith.constant 0 : i32
    %c0_i32_2 = arith.constant 0 : i32
    return %c0_i32, %c0_i32_0, %c0_i32_1 : i32, i32, i32
  }
  func.func @transform_7(%arg0: i32) -> (i32, i32) {
    %c0_i32 = arith.constant 0 : i32
    %c0_i32_0 = arith.constant 0 : i32
    %c0_i32_1 = arith.constant 0 : i32
    return %c0_i32, %c0_i32_0 : i32, i32
  }
  func.func @transform_8(%arg0: i32) -> (i32, i32) {
    %c0_i32 = arith.constant 0 : i32
    %c0_i32_0 = arith.constant 0 : i32
    %c0_i32_1 = arith.constant 0 : i32
    return %c0_i32, %c0_i32_0 : i32, i32
  }
  func.func @transform_9(%arg0: i32) -> (i32, i32) {
    %c0_i32 = arith.constant 0 : i32
    %c0_i32_0 = arith.constant 0 : i32
    return %arg0, %c0_i32 : i32, i32
  }
}

</mosaic_0001>

<llo_original>
// kernel: tpu_custom_call.1
$region0: #{tpu_custom_call.1}
  #allocation0 [shape = 'u32[]', space=smem, size = 0x4, offset = 0x4, fixed_abs, tag = 'smem constant byte address 0x4 - core index']
  #allocation1 [shape = 'u32[72,128]{1,0:T(1,128)}', space=vmem, size = 0x9000, scoped, tag = 'internal scratch']
  %s0 = inlined_call_operand.hbm [shape: f32[8,64], index: 0, kind: input, shape index: {}]
  %s1 = inlined_call_operand.hbm [shape: bf16[64,128], index: 1, kind: input, shape index: {}]
  %s2 = inlined_call_operand.vmem [shape: f32[1,128], index: 2, kind: input, shape index: {}]
  %s3 = inlined_call_operand.vmem [shape: bf16[128,128], index: 3, kind: input, shape index: {}]
  %s4 = inlined_call_operand.vmem [shape: f32[1,128], index: 4, kind: input, shape index: {}]
  %s5 = inlined_call_operand.hbm [shape: bf16[2,128,128], index: 5, kind: input, shape index: {}]
  %s6 = inlined_call_operand.vmem [shape: f32[2,1,128], index: 6, kind: input, shape index: {}]
  %s7 = inlined_call_operand.vmem [shape: bf16[128,8], index: 7, kind: input, shape index: {}]
  %s8 = inlined_call_operand.vmem [shape: f32[1,8], index: 8, kind: input, shape index: {}]
  %s9 = inlined_call_operand.hbm [shape: f32[8,8], index: 9, kind: output, shape index: {}]
  %s10 = sld [smem:[#allocation0]]
  $region58: #{tpu_custom_call.1} parent=0
    _
  %s12 = ssub.s32 1, %s10
  %s13 = scalar_select 0, %s12, %s10
  $region1: #{tpu_custom_call.1} parent=0
    #allocation2 [shape = 'u8[4096]{0}', space=vmem, size = 0x1000, scoped, tag = 'input window, operand 0, single buffered']
    #allocation3 [shape = 's32[1]{0}', space=sflag, size = 0x4, scoped, tag = 'scoped memory for tpu_custom_call.1']
    #allocation4 [shape = 's32[1]{0}', space=sflag, size = 0x4, scoped, tag = 'scoped memory for tpu_custom_call.1']
    #allocation5 [shape = 'u8[16384]{0}', space=vmem, size = 0x4000, scoped, tag = 'input window, operand 1, single buffered']
    #allocation6 [shape = 's32[1]{0}', space=sflag, size = 0x4, scoped, tag = 'scoped memory for tpu_custom_call.1']
    #allocation7 [shape = 'u8[65536]{0}', space=vmem, size = 0x10000, scoped, tag = 'input window, operand 5, single buffered']
    #allocation8 [shape = 'u8[4096]{0}', space=vmem, size = 0x1000, scoped, tag = 'output window, operand 0, single buffered']
    %14 = vsyncpa [#allocation3], 0
    %15 = vsyncpa [#allocation6], 0
    %16 = vsyncpa [#allocation4], 0
    // Predicated region
    $region2: #{tpu_custom_call.1} parent=1 // pred_check
      _
    $region3: #{tpu_custom_call.1} parent=1 // pred_check_branch
      %18 = sbr.rel (0) target = $region5
    $region4: #{tpu_custom_call.1} parent=1 // pred_region
      %20 = vsyncadd [#allocation3], 0
      %s22 = sshll.u32 %s0, 4
      %s23 = int_to_ptr.hbm [resolvable:$true] %s22
      %s24 = sshll.u32 [#allocation2], 4
      %s25 = int_to_ptr.vmem [resolvable:$true] %s24
      %27 = dma.hbm_to_vmem [thread:$0]  %s23, 128, %s25, [#allocation3]
    $region5: #{tpu_custom_call.1} parent=1 // pred_fallthru
      _
    // Predicated region
    $region6: #{tpu_custom_call.1} parent=1 // pred_check
      _
    $region7: #{tpu_custom_call.1} parent=1 // pred_check_branch
      %29 = sbr.rel (0) target = $region9
    $region8: #{tpu_custom_call.1} parent=1 // pred_region
      %31 = vsyncadd [#allocation6], 0
      %s32 = sshll.u32 %s1, 4
      %s33 = int_to_ptr.hbm [resolvable:$true] %s32
      %s34 = sshll.u32 [#allocation5], 4
      %s35 = int_to_ptr.vmem [resolvable:$true] %s34
      %40 = dma.hbm_to_vmem [thread:$0]  %s33, 512, %s35, [#allocation6], 64, 64, 4
    $region9: #{tpu_custom_call.1} parent=1 // pred_fallthru
      _
    // Predicated region
    $region10: #{tpu_custom_call.1} parent=1 // pred_check
      _
    $region11: #{tpu_custom_call.1} parent=1 // pred_check_branch
      %42 = sbr.rel (0) target = $region13
    $region12: #{tpu_custom_call.1} parent=1 // pred_region
      _
    $region13: #{tpu_custom_call.1} parent=1 // pred_fallthru
      _
    // Predicated region
    $region14: #{tpu_custom_call.1} parent=1 // pred_check
      _
    $region15: #{tpu_custom_call.1} parent=1 // pred_check_branch
      %44 = sbr.rel (0) target = $region17
    $region16: #{tpu_custom_call.1} parent=1 // pred_region
      _
    $region17: #{tpu_custom_call.1} parent=1 // pred_fallthru
      _
    // Predicated region
    $region18: #{tpu_custom_call.1} parent=1 // pred_check
      _
    $region19: #{tpu_custom_call.1} parent=1 // pred_check_branch
      %46 = sbr.rel (0) target = $region21
    $region20: #{tpu_custom_call.1} parent=1 // pred_region
      _
    $region21: #{tpu_custom_call.1} parent=1 // pred_fallthru
      _
    // Predicated region
    $region22: #{tpu_custom_call.1} parent=1 // pred_check
      _
    $region23: #{tpu_custom_call.1} parent=1 // pred_check_branch
      %48 = sbr.rel (0) target = $region25
    $region24: #{tpu_custom_call.1} parent=1 // pred_region
      %50 = vsyncadd [#allocation6], 0
      %s51 = sshll.u32 %s5, 4
      %s52 = int_to_ptr.hbm [resolvable:$true] %s51
      %s53 = sshll.u32 [#allocation7], 4
      %s54 = int_to_ptr.vmem [resolvable:$true] %s53
      %59 = dma.hbm_to_vmem [thread:$0]  %s52, 2048, %s54, [#allocation6], 64, 64, 4
    $region25: #{tpu_custom_call.1} parent=1 // pred_fallthru
      _
    // Predicated region
    $region26: #{tpu_custom_call.1} parent=1 // pred_check
      _
    $region27: #{tpu_custom_call.1} parent=1 // pred_check_branch
      %61 = sbr.rel (0) target = $region29
    $region28: #{tpu_custom_call.1} parent=1 // pred_region
      _
    $region29: #{tpu_custom_call.1} parent=1 // pred_fallthru
      _
    // Predicated region
    $region30: #{tpu_custom_call.1} parent=1 // pred_check
      _
    $region31: #{tpu_custom_call.1} parent=1 // pred_check_branch
      %63 = sbr.rel (0) target = $region33
    $region32: #{tpu_custom_call.1} parent=1 // pred_region
      _
    $region33: #{tpu_custom_call.1} parent=1 // pred_fallthru
      _
    // Predicated region
    $region34: #{tpu_custom_call.1} parent=1 // pred_check
      _
    $region35: #{tpu_custom_call.1} parent=1 // pred_check_branch
      %65 = sbr.rel (0) target = $region37
    $region36: #{tpu_custom_call.1} parent=1 // pred_region
      _
    $region37: #{tpu_custom_call.1} parent=1 // pred_fallthru
      _
    // Predicated region
    $region38: #{tpu_custom_call.1} parent=1 // pred_check
      _
    $region39: #{tpu_custom_call.1} parent=1 // pred_check_branch
      %67 = sbr.rel (0) target = $region41
    $region40: #{tpu_custom_call.1} parent=1 // pred_region
      %69 = dma.done [#allocation3], 128
    $region41: #{tpu_custom_call.1} parent=1 // pred_fallthru
      _
    // Predicated region
    $region42: #{tpu_custom_call.1} parent=1 // pred_check
      _
    $region43: #{tpu_custom_call.1} parent=1 // pred_check_branch
      %71 = sbr.rel (0) target = $region45
    $region44: #{tpu_custom_call.1} parent=1 // pred_region
      %73 = dma.done [#allocation6], 512
    $region45: #{tpu_custom_call.1} parent=1 // pred_fallthru
      _
    // Predicated region
    $region46: #{tpu_custom_call.1} parent=1 // pred_check
      _
    $region47: #{tpu_custom_call.1} parent=1 // pred_check_branch
      %75 = sbr.rel (0) target = $region49
    $region48: #{tpu_custom_call.1} parent=1 // pred_region
      %77 = dma.done [#allocation6], 2048
    $region49: #{tpu_custom_call.1} parent=1 // pred_fallthru
      _
    %v79 = vld [vmem:[#allocation2] sm:$0xff]
    %v80 = vpack.c.bf16 %v79, %v79
    %v81 = vld [vmem:[#allocation5] sm:$0xf]
    %v82 = vld [vmem:[#allocation5 + $0x4] sm:$0xf]
    %v83 = vld [vmem:[#allocation5 + $0x8] sm:$0xf]
    %v84 = vld [vmem:[#allocation5 + $0xc] sm:$0xf]
    %v85 = vld [vmem:[#allocation5 + $0x10] sm:$0xf]
    %v86 = vld [vmem:[#allocation5 + $0x14] sm:$0xf]
    %v87 = vld [vmem:[#allocation5 + $0x18] sm:$0xf]
    %v88 = vld [vmem:[#allocation5 + $0x1c] sm:$0xf]
    %v89 = vld [vmem:[%s2] sm:$0x1]
    %v91 = vperm.slane %v89, 0
    %v101 = vunpack.c.l.b16 %v81
    %v102 = vunpack.c.l.b16 %v82
    %v103 = vunpack.c.l.b16 %v83
    %v104 = vunpack.c.l.b16 %v84
    %v105 = vunpack.c.l.b16 %v85
    %v106 = vunpack.c.l.b16 %v86
    %v107 = vunpack.c.l.b16 %v87
    %v108 = vunpack.c.l.b16 %v88
    %v109 = vpack.c.b16 %v102, %v101
    %v110 = vpack.c.b16 %v104, %v103
    %v111 = vpack.c.b16 %v106, %v105
    %v112 = vpack.c.b16 %v108, %v107
    %vm117 = vcmask 523264
    %v119 = vsel %vm117, %v80, 0
    %121 = vmatpush.bf16.msra.mxu0 0
    %122 = vmatpush.bf16.msra.mxu0 0
    %123 = vmatpush.bf16.msra.mxu0 0
    %124 = vmatpush.bf16.msra.mxu0 0
    %125 = vmatpush.bf16.msra.mxu0 %v112
    %126 = vmatpush.bf16.msra.mxu0 %v111
    %127 = vmatpush.bf16.msra.mxu0 %v110
    %128 = vmatpush.bf16.msra.mxu0 %v109
    %129 = vmatmul.bf16.gmra.mxu0 %v119
    %v130 = vpop.f32.mrf.mxu0
    %v131 = vadd.f32 %v91, %v130
    %v132 = vpop.f32.mrf.mxu0
    %133 = vdwg.mxu0
    %v134 = vmax.f32 %v131, 0.0
    %v135 = vpack.c.bf16 %v134, %v134
    %v136 = vld [vmem:[%s3] sm:$0xf]
    %v137 = vld [vmem:[%s3 + $0x4] sm:$0xf]
    %v138 = vld [vmem:[%s3 + $0x8] sm:$0xf]
    %v139 = vld [vmem:[%s3 + $0xc] sm:$0xf]
    %v140 = vld [vmem:[%s3 + $0x10] sm:$0xf]
    %v141 = vld [vmem:[%s3 + $0x14] sm:$0xf]
    %v142 = vld [vmem:[%s3 + $0x18] sm:$0xf]
    %v143 = vld [vmem:[%s3 + $0x1c] sm:$0xf]
    %v144 = vld [vmem:[%s3 + $0x20] sm:$0xf]
    %v145 = vld [vmem:[%s3 + $0x24] sm:$0xf]
    %v146 = vld [vmem:[%s3 + $0x28] sm:$0xf]
    %v147 = vld [vmem:[%s3 + $0x2c] sm:$0xf]
    %v148 = vld [vmem:[%s3 + $0x30] sm:$0xf]
    %v149 = vld [vmem:[%s3 + $0x34] sm:$0xf]
    %v150 = vld [vmem:[%s3 + $0x38] sm:$0xf]
    %v151 = vld [vmem:[%s3 + $0x3c] sm:$0xf]
    %v152 = vld [vmem:[%s4] sm:$0x1]
    %v154 = vperm.slane %v152, 0
    %v172 = vunpack.c.l.b16 %v136
    %v173 = vunpack.c.l.b16 %v137
    %v174 = vunpack.c.l.b16 %v138
    %v175 = vunpack.c.l.b16 %v139
    %v176 = vunpack.c.l.b16 %v140
    %v177 = vunpack.c.l.b16 %v141
    %v178 = vunpack.c.l.b16 %v142
    %v179 = vunpack.c.l.b16 %v143
    %v180 = vunpack.c.l.b16 %v144
    %v181 = vunpack.c.l.b16 %v145
    %v182 = vunpack.c.l.b16 %v146
    %v183 = vunpack.c.l.b16 %v147
    %v184 = vunpack.c.l.b16 %v148
    %v185 = vunpack.c.l.b16 %v149
    %v186 = vunpack.c.l.b16 %v150
    %v187 = vunpack.c.l.b16 %v151
    %v188 = vpack.c.b16 %v173, %v172
    %v189 = vpack.c.b16 %v175, %v174
    %v190 = vpack.c.b16 %v177, %v176
    %v191 = vpack.c.b16 %v179, %v178
    %v192 = vpack.c.b16 %v181, %v180
    %v193 = vpack.c.b16 %v183, %v182
    %v194 = vpack.c.b16 %v185, %v184
    %v195 = vpack.c.b16 %v187, %v186
    %204 = vmatpush.bf16.msra.mxu0 %v195
    %205 = vmatpush.bf16.msra.mxu0 %v194
    %206 = vmatpush.bf16.msra.mxu0 %v193
    %207 = vmatpush.bf16.msra.mxu0 %v192
    %208 = vmatpush.bf16.msra.mxu0 %v191
    %209 = vmatpush.bf16.msra.mxu0 %v190
    %210 = vmatpush.bf16.msra.mxu0 %v189
    %211 = vmatpush.bf16.msra.mxu0 %v188
    %212 = vmatmul.bf16.gmra.mxu0 %v135
    %v213 = vpop.f32.mrf.mxu0
    %v214 = vadd.f32 %v154, %v213
    %v215 = vpop.f32.mrf.mxu0
    %216 = vdwg.mxu0
    %v217 = vmax.f32 %v214, 0.0
    %v218 = vpack.c.bf16 %v217, %v217
    %v219 = vld [vmem:[#allocation7] sm:$0xf]
    %v220 = vld [vmem:[#allocation7 + $0x4] sm:$0xf]
    %v221 = vld [vmem:[#allocation7 + $0x8] sm:$0xf]
    %v222 = vld [vmem:[#allocation7 + $0xc] sm:$0xf]
    %v223 = vld [vmem:[#allocation7 + $0x10] sm:$0xf]
    %v224 = vld [vmem:[#allocation7 + $0x14] sm:$0xf]
    %v225 = vld [vmem:[#allocation7 + $0x18] sm:$0xf]
    %v226 = vld [vmem:[#allocation7 + $0x1c] sm:$0xf]
    %v227 = vld [vmem:[#allocation7 + $0x20] sm:$0xf]
    %v228 = vld [vmem:[#allocation7 + $0x24] sm:$0xf]
    %v229 = vld [vmem:[#allocation7 + $0x28] sm:$0xf]
    %v230 = vld [vmem:[#allocation7 + $0x2c] sm:$0xf]
    %v231 = vld [vmem:[#allocation7 + $0x30] sm:$0xf]
    %v232 = vld [vmem:[#allocation7 + $0x34] sm:$0xf]
    %v233 = vld [vmem:[#allocation7 + $0x38] sm:$0xf]
    %v234 = vld [vmem:[#allocation7 + $0x3c] sm:$0xf]
    %v235 = vld [vmem:[%s6] sm:$0x1]
    %v237 = vperm.slane %v235, 0
    %v255 = vunpack.c.l.b16 %v219
    %v256 = vunpack.c.l.b16 %v220
    %v257 = vunpack.c.l.b16 %v221
    %v258 = vunpack.c.l.b16 %v222
    %v259 = vunpack.c.l.b16 %v223
    %v260 = vunpack.c.l.b16 %v224
    %v261 = vunpack.c.l.b16 %v225
    %v262 = vunpack.c.l.b16 %v226
    %v263 = vunpack.c.l.b16 %v227
    %v264 = vunpack.c.l.b16 %v228
    %v265 = vunpack.c.l.b16 %v229
    %v266 = vunpack.c.l.b16 %v230
    %v267 = vunpack.c.l.b16 %v231
    %v268 = vunpack.c.l.b16 %v232
    %v269 = vunpack.c.l.b16 %v233
    %v270 = vunpack.c.l.b16 %v234
    %v271 = vpack.c.b16 %v256, %v255
    %v272 = vpack.c.b16 %v258, %v257
    %v273 = vpack.c.b16 %v260, %v259
    %v274 = vpack.c.b16 %v262, %v261
    %v275 = vpack.c.b16 %v264, %v263
    %v276 = vpack.c.b16 %v266, %v265
    %v277 = vpack.c.b16 %v268, %v267
    %v278 = vpack.c.b16 %v270, %v269
    %287 = vmatpush.bf16.msra.mxu0 %v278
    %288 = vmatpush.bf16.msra.mxu0 %v277
    %289 = vmatpush.bf16.msra.mxu0 %v276
    %290 = vmatpush.bf16.msra.mxu0 %v275
    %291 = vmatpush.bf16.msra.mxu0 %v274
    %292 = vmatpush.bf16.msra.mxu0 %v273
    %293 = vmatpush.bf16.msra.mxu0 %v272
    %294 = vmatpush.bf16.msra.mxu0 %v271
    %295 = vmatmul.bf16.gmra.mxu0 %v218
    %v296 = vpop.f32.mrf.mxu0
    %v297 = vadd.f32 %v237, %v296
    %v298 = vpop.f32.mrf.mxu0
    %299 = vdwg.mxu0
    %v300 = vmax.f32 %v297, 0.0
    %v301 = vpack.c.bf16 %v300, %v300
    %s302 = scalar_lea.vmem [#allocation7], 64
    %v303 = vld [vmem:[%s302] sm:$0xf]
    %v304 = vld [vmem:[%s302 + $0x4] sm:$0xf]
    %v305 = vld [vmem:[%s302 + $0x8] sm:$0xf]
    %v306 = vld [vmem:[%s302 + $0xc] sm:$0xf]
    %v307 = vld [vmem:[%s302 + $0x10] sm:$0xf]
    %v308 = vld [vmem:[%s302 + $0x14] sm:$0xf]
    %v309 = vld [vmem:[%s302 + $0x18] sm:$0xf]
    %v310 = vld [vmem:[%s302 + $0x1c] sm:$0xf]
    %v311 = vld [vmem:[%s302 + $0x20] sm:$0xf]
    %v312 = vld [vmem:[%s302 + $0x24] sm:$0xf]
    %v313 = vld [vmem:[%s302 + $0x28] sm:$0xf]
    %v314 = vld [vmem:[%s302 + $0x2c] sm:$0xf]
    %v315 = vld [vmem:[%s302 + $0x30] sm:$0xf]
    %v316 = vld [vmem:[%s302 + $0x34] sm:$0xf]
    %v317 = vld [vmem:[%s302 + $0x38] sm:$0xf]
    %v318 = vld [vmem:[%s302 + $0x3c] sm:$0xf]
    %s319 = scalar_lea.vmem %s6, 1
    %v320 = vld [vmem:[%s319] sm:$0x1]
    %v322 = vperm.slane %v320, 0
    %v340 = vunpack.c.l.b16 %v303
    %v341 = vunpack.c.l.b16 %v304
    %v342 = vunpack.c.l.b16 %v305
    %v343 = vunpack.c.l.b16 %v306
    %v344 = vunpack.c.l.b16 %v307
    %v345 = vunpack.c.l.b16 %v308
    %v346 = vunpack.c.l.b16 %v309
    %v347 = vunpack.c.l.b16 %v310
    %v348 = vunpack.c.l.b16 %v311
    %v349 = vunpack.c.l.b16 %v312
    %v350 = vunpack.c.l.b16 %v313
    %v351 = vunpack.c.l.b16 %v314
    %v352 = vunpack.c.l.b16 %v315
    %v353 = vunpack.c.l.b16 %v316
    %v354 = vunpack.c.l.b16 %v317
    %v355 = vunpack.c.l.b16 %v318
    %v356 = vpack.c.b16 %v341, %v340
    %v357 = vpack.c.b16 %v343, %v342
    %v358 = vpack.c.b16 %v345, %v344
    %v359 = vpack.c.b16 %v347, %v346
    %v360 = vpack.c.b16 %v349, %v348
    %v361 = vpack.c.b16 %v351, %v350
    %v362 = vpack.c.b16 %v353, %v352
    %v363 = vpack.c.b16 %v355, %v354
    %372 = vmatpush.bf16.msra.mxu0 %v363
    %373 = vmatpush.bf16.msra.mxu0 %v362
    %374 = vmatpush.bf16.msra.mxu0 %v361
    %375 = vmatpush.bf16.msra.mxu0 %v360
    %376 = vmatpush.bf16.msra.mxu0 %v359
    %377 = vmatpush.bf16.msra.mxu0 %v358
    %378 = vmatpush.bf16.msra.mxu0 %v357
    %379 = vmatpush.bf16.msra.mxu0 %v356
    %380 = vmatmul.bf16.gmra.mxu0 %v301
    %v381 = vpop.f32.mrf.mxu0
    %v382 = vadd.f32 %v322, %v381
    %v383 = vpop.f32.mrf.mxu0
    %384 = vdwg.mxu0
    %v385 = vmax.f32 %v382, 0.0
    %v386 = vpack.c.bf16 %v385, %v385
    %v387 = vld [vmem:[%s7] sm:$0xf]
    %v388 = vld [vmem:[%s7 + $0x4] sm:$0xf]
    %v389 = vld [vmem:[%s7 + $0x8] sm:$0xf]
    %v390 = vld [vmem:[%s7 + $0xc] sm:$0xf]
    %v391 = vld [vmem:[%s7 + $0x10] sm:$0xf]
    %v392 = vld [vmem:[%s7 + $0x14] sm:$0xf]
    %v393 = vld [vmem:[%s7 + $0x18] sm:$0xf]
    %v394 = vld [vmem:[%s7 + $0x1c] sm:$0xf]
    %v395 = vld [vmem:[%s7 + $0x20] sm:$0xf]
    %v396 = vld [vmem:[%s7 + $0x24] sm:$0xf]
    %v397 = vld [vmem:[%s7 + $0x28] sm:$0xf]
    %v398 = vld [vmem:[%s7 + $0x2c] sm:$0xf]
    %v399 = vld [vmem:[%s7 + $0x30] sm:$0xf]
    %v400 = vld [vmem:[%s7 + $0x34] sm:$0xf]
    %v401 = vld [vmem:[%s7 + $0x38] sm:$0xf]
    %v402 = vld [vmem:[%s7 + $0x3c] sm:$0xf]
    %v403 = vld [vmem:[%s8] sm:$0x1]
    %v405 = vperm.slane %v403, 0
    %v423 = vunpack.c.l.b16 %v387
    %v424 = vunpack.c.l.b16 %v388
    %v425 = vunpack.c.l.b16 %v389
    %v426 = vunpack.c.l.b16 %v390
    %v427 = vunpack.c.l.b16 %v391
    %v428 = vunpack.c.l.b16 %v392
    %v429 = vunpack.c.l.b16 %v393
    %v430 = vunpack.c.l.b16 %v394
    %v431 = vunpack.c.l.b16 %v395
    %v432 = vunpack.c.l.b16 %v396
    %v433 = vunpack.c.l.b16 %v397
    %v434 = vunpack.c.l.b16 %v398
    %v435 = vunpack.c.l.b16 %v399
    %v436 = vunpack.c.l.b16 %v400
    %v437 = vunpack.c.l.b16 %v401
    %v438 = vunpack.c.l.b16 %v402
    %v439 = vpack.c.b16 %v424, %v423
    %v440 = vpack.c.b16 %v426, %v425
    %v441 = vpack.c.b16 %v428, %v427
    %v442 = vpack.c.b16 %v430, %v429
    %v443 = vpack.c.b16 %v432, %v431
    %v444 = vpack.c.b16 %v434, %v433
    %v445 = vpack.c.b16 %v436, %v435
    %v446 = vpack.c.b16 %v438, %v437
    %455 = vmatpush.bf16.msra.mxu0 %v446
    %456 = vmatpush.bf16.msra.mxu0 %v445
    %457 = vmatpush.bf16.msra.mxu0 %v444
    %458 = vmatpush.bf16.msra.mxu0 %v443
    %459 = vmatpush.bf16.msra.mxu0 %v442
    %460 = vmatpush.bf16.msra.mxu0 %v441
    %461 = vmatpush.bf16.msra.mxu0 %v440
    %462 = vmatpush.bf16.msra.mxu0 %v439
    %463 = vmatmul.bf16.gmra.mxu0 %v386
    %v464 = vpop.f32.mrf.mxu0
    %v465 = vadd.f32 %v405, %v464
    %v466 = vpop.f32.mrf.mxu0
    %467 = vdwg.mxu0
    %vm468 = vcmask 64512
    %469 = vst.msk [vmem:[#allocation8] sm:$0xff] %vm468, %v465
    // Predicated region
    $region50: #{tpu_custom_call.1} parent=1 // pred_check
      _
    $region51: #{tpu_custom_call.1} parent=1 // pred_check_branch
      %471 = sbr.rel (0) target = $region53
    $region52: #{tpu_custom_call.1} parent=1 // pred_region
      %473 = vsyncadd [#allocation4], 0
      %s475 = sshll.u32 [#allocation8], 4
      %s476 = int_to_ptr.vmem [resolvable:$true] %s475
      %s477 = sshll.u32 %s9, 4
      %s478 = int_to_ptr.hbm [resolvable:$true] %s477
      %480 = dma.vmem_to_hbm [thread:$0]  %s476, 128, %s478, [#allocation4]
    $region53: #{tpu_custom_call.1} parent=1 // pred_fallthru
      _
    // Predicated region
    $region54: #{tpu_custom_call.1} parent=1 // pred_check
      _
    $region55: #{tpu_custom_call.1} parent=1 // pred_check_branch
      %482 = sbr.rel (0) target = $region57
    $region56: #{tpu_custom_call.1} parent=1 // pred_region
      %484 = dma.done [#allocation4], 128
    $region57: #{tpu_custom_call.1} parent=1 // pred_fallthru
      _
    %485 = vsyncpa [#allocation3], 1
    %486 = vsyncpa [#allocation6], 1
    %487 = vsyncpa [#allocation4], 1

</llo_original>
